<compile_context>
chip_gen: v5e
topology: v5e:2x2
jax: 0.10.0
libtpu: 0.0.40
codegen_flags: <defaults>
</compile_context>

<pallas_src>
import functools
import math

import jax
import jax.numpy as jnp
from jax import lax
from jax.experimental import pallas as pl
from jax.experimental.pallas import tpu as pltpu

_OUT_ROWS = 8  # sublane-padded output rows: 0=logp, 1=value, 2=entropy, 3..7=pad


def _round_up(x, m):
    return (x + m - 1) // m * m


# ---------------------------------------------------------------------------
# Kernel: one batch tile of the fused actor+critic evaluate() pass.
# ---------------------------------------------------------------------------
def _actor_critic_kernel(
    action_ref,                    # (TB, 1)   int32
    state_ref,                     # (TB, S)   f32
    w1_ref, b1_ref,                # (S, HC)   / (1, HC)
    w2_ref, b2_ref,                # (HC, HC)  / (1, HC)
    w3_ref, b3_ref,                # (HC, OUT) / (1, OUT)
    out_ref,                       # (8, TB)   f32  transposed output slab
    *, action_dim,
):
    cdt = w1_ref.dtype                        # matmul-input dtype (f32 or bf16)
    x = state_ref[...].astype(cdt)

    # Fused actor|critic MLP: 3 MXU matmuls (block-diagonal packed weights),
    # f32 accumulation; tanh / softmax math stays f32 (v5e VPU/EUP are f32-only).
    h = jnp.tanh(jnp.dot(x, w1_ref[...], preferred_element_type=jnp.float32)
                 + b1_ref[...])
    h = jnp.tanh(jnp.dot(h.astype(cdt), w2_ref[...],
                         preferred_element_type=jnp.float32) + b2_ref[...])
    fused = (jnp.dot(h.astype(cdt), w3_ref[...],
                     preferred_element_type=jnp.float32)
             + b3_ref[...])                                   # (TB, OUT) f32

    tb, out_w = fused.shape
    col = lax.broadcasted_iota(jnp.int32, (tb, out_w), 1)

    # Stable log-softmax over lanes [0, action_dim). Non-logit lanes (value
    # lane + padding) get a large *finite* negative so exp underflows to
    # exactly 0 (no 0*inf NaN) and they drop out of every sum below.
    neg = jnp.float32(-1e9)
    logits = jnp.where(col < action_dim, fused, neg)
    m = jnp.max(logits, axis=-1, keepdims=True)               # (TB, 1)
    z = logits - m
    e = jnp.exp(z)                                            # masked lanes -> 0
    z_sel = jnp.where(col == action_ref[...], z, 0.0)         # z at taken action

    # Lane reductions as trans_b matmuls against ones / one-hot selector rows:
    # each yields a (1, TB) row vector, i.e. the transposed output layout for
    # free, and the reduce work rides the (otherwise idle) MXU.
    dn = (((1,), (1,)), ((), ()))                             # contract lane dims
    ones_row = jnp.ones((1, out_w), jnp.float32)
    val_sel = (lax.broadcasted_iota(jnp.int32, (1, out_w), 1) == action_dim
               ).astype(jnp.float32)
    s_e   = lax.dot_general(ones_row, e,      dn, preferred_element_type=jnp.float32)
    s_ez  = lax.dot_general(ones_row, e * z,  dn, preferred_element_type=jnp.float32)
    s_zs  = lax.dot_general(ones_row, z_sel,  dn, preferred_element_type=jnp.float32)
    value = lax.dot_general(val_sel,  fused,  dn, preferred_element_type=jnp.float32)

    log_d = jnp.log(s_e)                                      # (1, TB)
    logp = s_zs - log_d                                       # log pi(a|s)
    entropy = log_d - s_ez / s_e                              # exact divide

    # Transposed, lane-dense output slab: row0=logp, row1=value, row2=entropy.
    rows = lax.broadcasted_iota(jnp.int32, out_ref.shape, 0)
    out_ref[...] = jnp.where(rows == 0, logp,
                   jnp.where(rows == 1, value,
                   jnp.where(rows == 2, entropy, 0.0)))


# ---------------------------------------------------------------------------
# Parameter init / packing
# ---------------------------------------------------------------------------
def init_params(key, state_dim, action_dim, hidden_dim):
    """nn.Linear-style init (uniform +/- 1/sqrt(fan_in)); weights as (in,out)."""
    def linear(k, fan_in, fan_out):
        kw, kb = jax.random.split(k)
        bound = 1.0 / math.sqrt(fan_in)
        w = jax.random.uniform(kw, (fan_in, fan_out), jnp.float32, -bound, bound)
        b = jax.random.uniform(kb, (1, fan_out), jnp.float32, -bound, bound)
        return w, b

    keys = jax.random.split(key, 6)
    p = {}
    p["w1a"], p["b1a"] = linear(keys[0], state_dim, hidden_dim)
    p["w2a"], p["b2a"] = linear(keys[1], hidden_dim, hidden_dim)
    p["w3a"], p["b3a"] = linear(keys[2], hidden_dim, action_dim)
    p["w1v"], p["b1v"] = linear(keys[3], state_dim, hidden_dim)
    p["w2v"], p["b2v"] = linear(keys[4], hidden_dim, hidden_dim)
    p["w3v"], p["b3v"] = linear(keys[5], hidden_dim, 1)
    return p


def pack_params(p, *, state_dim, action_dim, hidden_dim,
                weight_dtype=jnp.float32):
    """Fuse actor & critic heads into 3 block-diagonal, 128-lane-padded matmuls.

    Layer 1: [w1a | w1v]             -> (S, HC)
    Layer 2: blockdiag(w2a, w2v)     -> (HC, HC)
    Layer 3: blockdiag(w3a, w3v)     -> (HC, OUT)  (lanes [0,A)=logits, A=value)
    Zero-padded hidden columns give tanh(0)=0 and never leak into real lanes.
    """
    H, A, S = hidden_dim, action_dim, state_dim
    HC = _round_up(max(2 * H, 128), 128)       # fused hidden width (lane-dense)
    HP = HC // 2                               # padded hidden slots per head
    OUT = _round_up(max(A + 1, 128), 128)      # [logits | value | pad]

    w1 = jnp.zeros((S, HC), jnp.float32)
    w1 = w1.at[:, :H].set(p["w1a"]).at[:, HP:HP + H].set(p["w1v"])
    b1 = jnp.zeros((1, HC), jnp.float32)
    b1 = b1.at[:, :H].set(p["b1a"]).at[:, HP:HP + H].set(p["b1v"])

    w2 = jnp.zeros((HC, HC), jnp.float32)
    w2 = w2.at[:H, :H].set(p["w2a"]).at[HP:HP + H, HP:HP + H].set(p["w2v"])
    b2 = jnp.zeros((1, HC), jnp.float32)
    b2 = b2.at[:, :H].set(p["b2a"]).at[:, HP:HP + H].set(p["b2v"])

    w3 = jnp.zeros((HC, OUT), jnp.float32)
    w3 = w3.at[:H, :A].set(p["w3a"]).at[HP:HP + H, A:A + 1].set(p["w3v"])
    b3 = jnp.zeros((1, OUT), jnp.float32)
    b3 = b3.at[:, :A].set(p["b3a"]).at[:, A:A + 1].set(p["b3v"])

    packed = {
        # Matmul inputs may be bf16 on any generation (MXU is bf16-native,
        # accumulation is f32 in-kernel); biases stay f32.
        "w1": w1.astype(weight_dtype), "b1": b1,
        "w2": w2.astype(weight_dtype), "b2": b2,
        "w3": w3.astype(weight_dtype), "b3": b3,
    }
    meta = {"state_dim": S, "action_dim": A,
            "hidden_fused": HC, "out_width": OUT}
    return packed, meta


# ---------------------------------------------------------------------------
# Wrapper
# ---------------------------------------------------------------------------
def actor_critic_evaluate(state, action, packed, meta, *, block_b=1024):
    """Pallas equivalent of ActorCritic.evaluate(state, action).

    state : (B, state_dim) float32
    action: (B,) int32
    returns (action_logprobs (B,), state_value (B,), dist_entropy (B,))
    """
    B, S = state.shape
    A = meta["action_dim"]
    HC = meta["hidden_fused"]
    OUT = meta["out_width"]

    # Batch tile: multiple of 128 so the transposed (8, TB) output block is
    # lane-dense / unmasked on the multi-tile path.  Default 1024 amortizes
    # the ~0.35us per-grid-step cost while keeping live f32 intermediates
    # (~6 x (TB,128) ~ 3 MiB) far below the v5e 16 MiB scoped-VMEM default
    # and v7x's 32 MiB scoped / 64 MiB physical VMEM.
    TB = min(_round_up(max(block_b, 128), 128), _round_up(B, 128))
    Bp = _round_up(B, TB)
    if Bp != B:
        state = jnp.pad(state, ((0, Bp - B), (0, 0)))
        action = jnp.pad(action, (0, Bp - B))
    action2d = action.reshape(Bp, 1).astype(jnp.int32)

    kernel = functools.partial(_actor_critic_kernel, action_dim=A)

    weight_bytes = sum(int(v.size) * v.dtype.itemsize for v in packed.values())
    cost = pl.CostEstimate(
        flops=int(2 * Bp * (S * HC + HC * HC + HC * OUT) + 8 * Bp * OUT),
        transcendentals=int(Bp * (2 * HC + OUT + 2)),
        bytes_accessed=int(Bp * S * 4 + Bp * 4 + _OUT_ROWS * Bp * 4 + weight_bytes),
    )

    # TODO(synk): on v7x, switch dimension_semantics to pltpu.CORE_PARALLEL
    # (and single-buffer the weight specs with pipeline_mode=pl.Buffered(1)
    # when hidden_dim is large) to engage both TensorCores explicitly.
    slab = pl.pallas_call(
        kernel,
        grid=(Bp // TB,),
        in_specs=[
            pl.BlockSpec((TB, 1), lambda i: (i, 0)),     # action tile
            pl.BlockSpec((TB, S), lambda i: (i, 0)),     # state tile
            pl.BlockSpec((S, HC), lambda i: (0, 0)),     # w1 (VMEM-resident)
            pl.BlockSpec((1, HC), lambda i: (0, 0)),     # b1
            pl.BlockSpec((HC, HC), lambda i: (0, 0)),    # w2
            pl.BlockSpec((1, HC), lambda i: (0, 0)),     # b2
            pl.BlockSpec((HC, OUT), lambda i: (0, 0)),   # w3
            pl.BlockSpec((1, OUT), lambda i: (0, 0)),    # b3
        ],
        out_specs=pl.BlockSpec((_OUT_ROWS, TB), lambda i: (0, i)),
        out_shape=jax.ShapeDtypeStruct((_OUT_ROWS, Bp), jnp.float32),
        compiler_params=pltpu.CompilerParams(
            dimension_semantics=("parallel",),
            vmem_limit_bytes=32 * 1024 * 1024,           # <= physical on all gens
        ),
        cost_estimate=cost,
    )(action2d, state, packed["w1"], packed["b1"], packed["w2"],
      packed["b2"], packed["w3"], packed["b3"])

    return slab[0, :B], slab[1, :B], slab[2, :B]


# ---------------------------------------------------------------------------
# Pure-JAX reference of the torch evaluate() semantics
# ---------------------------------------------------------------------------
def _reference_evaluate(state, action, p):
    h = jnp.tanh(state @ p["w1a"] + p["b1a"])
    h = jnp.tanh(h @ p["w2a"] + p["b2a"])
    logits = h @ p["w3a"] + p["b3a"]
    logp_all = jax.nn.log_softmax(logits, axis=-1)
    probs = jax.nn.softmax(logits, axis=-1)
    logp = jnp.take_along_axis(logp_all, action[:, None], axis=-1)[:, 0]
    entropy = -jnp.sum(probs * logp_all, axis=-1)
    hv = jnp.tanh(state @ p["w1v"] + p["b1v"])
    hv = jnp.tanh(hv @ p["w2v"] + p["b2v"])
    value = (hv @ p["w3v"] + p["b3v"])[:, 0]
    return logp, value, entropy


if __name__ == "__main__":
    # small, forward-consistent shapes
    batch, state_dim, action_dim, hidden_dim = 8, 16, 8, 32

    key = jax.random.PRNGKey(0)
    k_params, k_state, k_action = jax.random.split(key, 3)

    params = init_params(k_params, state_dim, action_dim, hidden_dim)
    state = jax.random.normal(k_state, (batch, state_dim), dtype=jnp.float32)
    action = jax.random.randint(k_action, (batch,), 0, action_dim, dtype=jnp.int32)

    logp_r, value_r, entropy_r = _reference_evaluate(state, action, params)

    # --- f32 weights (tight-tolerance path) ---
    packed, meta = pack_params(params, state_dim=state_dim,
                               action_dim=action_dim, hidden_dim=hidden_dim)
    logp, value, entropy = actor_critic_evaluate(state, action, packed, meta)
    jax.block_until_ready((logp, value, entropy))
    assert logp.shape == (batch,) and value.shape == (batch,) and entropy.shape == (batch,)
    assert jnp.allclose(logp, logp_r, atol=1e-4), "log_prob mismatch"
    assert jnp.allclose(value, value_r, atol=1e-4), "value mismatch"
    assert jnp.allclose(entropy, entropy_r, atol=2e-4), "entropy mismatch"

    # --- multi-tile grid + batch-padding path (grid of 3 tiles, Bp=384) ---
    b2 = 300
    ks2, ka2 = jax.random.split(jax.random.PRNGKey(1))
    state2 = jax.random.normal(ks2, (b2, state_dim), dtype=jnp.float32)
    action2 = jax.random.randint(ka2, (b2,), 0, action_dim, dtype=jnp.int32)
    lp2, v2, e2 = actor_critic_evaluate(state2, action2, packed, meta, block_b=128)
    jax.block_until_ready((lp2, v2, e2))
    lp2_r, v2_r, e2_r = _reference_evaluate(state2, action2, params)
    assert jnp.allclose(lp2, lp2_r, atol=1e-4), "grid log_prob mismatch"
    assert jnp.allclose(v2, v2_r, atol=1e-4), "grid value mismatch"
    assert jnp.allclose(e2, e2_r, atol=2e-4), "grid entropy mismatch"

    # --- bf16 weights / matmul inputs (all generations), f32 accumulation ---
    packed_bf, meta_bf = pack_params(params, state_dim=state_dim,
                                     action_dim=action_dim,
                                     hidden_dim=hidden_dim,
                                     weight_dtype=jnp.bfloat16)
    lp3, v3, e3 = actor_critic_evaluate(state, action, packed_bf, meta_bf)
    jax.block_until_ready((lp3, v3, e3))
    assert jnp.allclose(lp3, logp_r, atol=0.1), "bf16 log_prob mismatch"
    assert jnp.allclose(v3, value_r, atol=0.1), "bf16 value mismatch"
    assert jnp.allclose(e3, entropy_r, atol=0.1), "bf16 entropy mismatch"

    print("KERNEL_OK")
</pallas_src>

<mosaic_0001>
module attributes {stable_mosaic.version = 11 : i64} {
  func.func @_actor_critic_kernel(%arg0: i32, %arg1: memref<128x1xi32, #tpu.memory_space<vmem>>, %arg2: memref<128x16xf32, #tpu.memory_space<vmem>>, %arg3: memref<16x128xf32, #tpu.memory_space<vmem>>, %arg4: memref<1x128xf32, #tpu.memory_space<vmem>>, %arg5: memref<128x128xf32, #tpu.memory_space<vmem>>, %arg6: memref<1x128xf32, #tpu.memory_space<vmem>>, %arg7: memref<128x128xf32, #tpu.memory_space<vmem>>, %arg8: memref<1x128xf32, #tpu.memory_space<vmem>>, %arg9: memref<8x128xf32, #tpu.memory_space<vmem>>) attributes {dimension_semantics = [#tpu.dimension_semantics<parallel>], iteration_bounds = array<i64: 1>, scalar_prefetch = 0 : i64, scratch_operands = 0 : i64, tpu.core_type = #tpu.core_type<tc>, window_params = [{transform_indices = @transform_0, window_bounds = array<i64: 128, 1>}, {transform_indices = @transform_1, window_bounds = array<i64: 128, 16>}, {pipeline_mode = #tpu.pipeline_mode<synchronous>, transform_indices = @transform_2, window_bounds = array<i64: 16, 128>}, {pipeline_mode = #tpu.pipeline_mode<synchronous>, transform_indices = @transform_3, window_bounds = array<i64: 1, 128>}, {pipeline_mode = #tpu.pipeline_mode<synchronous>, transform_indices = @transform_4, window_bounds = array<i64: 128, 128>}, {pipeline_mode = #tpu.pipeline_mode<synchronous>, transform_indices = @transform_5, window_bounds = array<i64: 1, 128>}, {pipeline_mode = #tpu.pipeline_mode<synchronous>, transform_indices = @transform_6, window_bounds = array<i64: 128, 128>}, {pipeline_mode = #tpu.pipeline_mode<synchronous>, transform_indices = @transform_7, window_bounds = array<i64: 1, 128>}, {transform_indices = @transform_8, window_bounds = array<i64: 8, 128>}]} {
    %c0 = arith.constant 0 : index
    %c0_0 = arith.constant 0 : index
    %0 = vector.load %arg2[%c0, %c0_0] : memref<128x16xf32, #tpu.memory_space<vmem>>, vector<128x16xf32>
    %c0_1 = arith.constant 0 : index
    %c0_2 = arith.constant 0 : index
    %1 = vector.load %arg3[%c0_1, %c0_2] : memref<16x128xf32, #tpu.memory_space<vmem>>, vector<16x128xf32>
    %cst = arith.constant dense<0.000000e+00> : vector<128x128xf32>
    %2 = tpu.matmul %0, %1, %cst {dimension_numbers = #tpu.dot_dimension_numbers<[1], [0], [0], [1], [0, 0, 1, 1], [], []>} : vector<128x16xf32>, vector<16x128xf32>, vector<128x128xf32> -> vector<128x128xf32>
    %c0_3 = arith.constant 0 : index
    %c0_4 = arith.constant 0 : index
    %3 = vector.load %arg4[%c0_3, %c0_4] : memref<1x128xf32, #tpu.memory_space<vmem>>, vector<1x128xf32>
    %4 = vector.broadcast %3 : vector<1x128xf32> to vector<128x128xf32>
    %5 = arith.addf %2, %4 : vector<128x128xf32>
    %6 = math.tanh %5 : vector<128x128xf32>
    %c0_5 = arith.constant 0 : index
    %c0_6 = arith.constant 0 : index
    %7 = vector.load %arg5[%c0_5, %c0_6] : memref<128x128xf32, #tpu.memory_space<vmem>>, vector<128x128xf32>
    %cst_7 = arith.constant dense<0.000000e+00> : vector<128x128xf32>
    %8 = tpu.matmul %6, %7, %cst_7 {dimension_numbers = #tpu.dot_dimension_numbers<[1], [0], [0], [1], [0, 0, 1, 1], [], []>} : vector<128x128xf32>, vector<128x128xf32>, vector<128x128xf32> -> vector<128x128xf32>
    %c0_8 = arith.constant 0 : index
    %c0_9 = arith.constant 0 : index
    %9 = vector.load %arg6[%c0_8, %c0_9] : memref<1x128xf32, #tpu.memory_space<vmem>>, vector<1x128xf32>
    %10 = vector.broadcast %9 : vector<1x128xf32> to vector<128x128xf32>
    %11 = arith.addf %8, %10 : vector<128x128xf32>
    %12 = math.tanh %11 : vector<128x128xf32>
    %c0_10 = arith.constant 0 : index
    %c0_11 = arith.constant 0 : index
    %13 = vector.load %arg7[%c0_10, %c0_11] : memref<128x128xf32, #tpu.memory_space<vmem>>, vector<128x128xf32>
    %cst_12 = arith.constant dense<0.000000e+00> : vector<128x128xf32>
    %14 = tpu.matmul %12, %13, %cst_12 {dimension_numbers = #tpu.dot_dimension_numbers<[1], [0], [0], [1], [0, 0, 1, 1], [], []>} : vector<128x128xf32>, vector<128x128xf32>, vector<128x128xf32> -> vector<128x128xf32>
    %c0_13 = arith.constant 0 : index
    %c0_14 = arith.constant 0 : index
    %15 = vector.load %arg8[%c0_13, %c0_14] : memref<1x128xf32, #tpu.memory_space<vmem>>, vector<1x128xf32>
    %16 = vector.broadcast %15 : vector<1x128xf32> to vector<128x128xf32>
    %17 = arith.addf %14, %16 : vector<128x128xf32>
    %18 = tpu.iota {dimensions = array<i32: 1>} : vector<128x128xi32>
    %c8_i32 = arith.constant 8 : i32
    %19 = vector.broadcast %c8_i32 : i32 to vector<128x128xi32>
    %20 = arith.cmpi slt, %18, %19 : vector<128x128xi32>
    %cst_15 = arith.constant -1.000000e+09 : f32
    %21 = vector.broadcast %cst_15 : f32 to vector<128x128xf32>
    %22 = arith.select %20, %17, %21 : vector<128x128xi1>, vector<128x128xf32>
    %cst_16 = arith.constant dense<0xFF800000> : vector<128xf32>
    %23 = vector.multi_reduction <maximumf>, %22, %cst_16 [1] : vector<128x128xf32> to vector<128xf32>
    %24 = vector.shape_cast %23 : vector<128xf32> to vector<128x1xf32>
    %25 = vector.broadcast %24 : vector<128x1xf32> to vector<128x128xf32>
    %26 = arith.subf %22, %25 : vector<128x128xf32>
    %27 = math.exp %26 : vector<128x128xf32>
    %c0_17 = arith.constant 0 : index
    %c0_18 = arith.constant 0 : index
    %28 = vector.load %arg1[%c0_17, %c0_18] : memref<128x1xi32, #tpu.memory_space<vmem>>, vector<128x1xi32>
    %29 = vector.broadcast %28 : vector<128x1xi32> to vector<128x128xi32>
    %30 = arith.cmpi eq, %18, %29 : vector<128x128xi32>
    %cst_19 = arith.constant 0.000000e+00 : f32
    %31 = vector.broadcast %cst_19 : f32 to vector<128x128xf32>
    %32 = arith.select %30, %26, %31 : vector<128x128xi1>, vector<128x128xf32>
    %cst_20 = arith.constant 1.000000e+00 : f32
    %33 = vector.broadcast %cst_20 : f32 to vector<1x128xf32>
    %34 = tpu.iota {dimensions = array<i32: 1>} : vector<1x128xi32>
    %c8_i32_21 = arith.constant 8 : i32
    %35 = vector.broadcast %c8_i32_21 : i32 to vector<1x128xi32>
    %36 = arith.cmpi eq, %34, %35 : vector<1x128xi32>
    %37 = arith.extui %36 : vector<1x128xi1> to vector<1x128xi32>
    %38 = arith.sitofp %37 : vector<1x128xi32> to vector<1x128xf32>
    %cst_22 = arith.constant dense<0.000000e+00> : vector<1x128xf32>
    %39 = tpu.matmul %33, %27, %cst_22 {dimension_numbers = #tpu.dot_dimension_numbers<[1], [1], [0], [0], [0, 0, 1, 0], [], []>} : vector<1x128xf32>, vector<128x128xf32>, vector<1x128xf32> -> vector<1x128xf32>
    %40 = arith.mulf %27, %26 : vector<128x128xf32>
    %cst_23 = arith.constant dense<0.000000e+00> : vector<1x128xf32>
    %41 = tpu.matmul %33, %40, %cst_23 {dimension_numbers = #tpu.dot_dimension_numbers<[1], [1], [0], [0], [0, 0, 1, 0], [], []>} : vector<1x128xf32>, vector<128x128xf32>, vector<1x128xf32> -> vector<1x128xf32>
    %cst_24 = arith.constant dense<0.000000e+00> : vector<1x128xf32>
    %42 = tpu.matmul %33, %32, %cst_24 {dimension_numbers = #tpu.dot_dimension_numbers<[1], [1], [0], [0], [0, 0, 1, 0], [], []>} : vector<1x128xf32>, vector<128x128xf32>, vector<1x128xf32> -> vector<1x128xf32>
    %cst_25 = arith.constant dense<0.000000e+00> : vector<1x128xf32>
    %43 = tpu.matmul %38, %17, %cst_25 {dimension_numbers = #tpu.dot_dimension_numbers<[1], [1], [0], [0], [0, 0, 1, 0], [], []>} : vector<1x128xf32>, vector<128x128xf32>, vector<1x128xf32> -> vector<1x128xf32>
    %44 = math.log %39 : vector<1x128xf32>
    %45 = arith.subf %42, %44 : vector<1x128xf32>
    %46 = arith.divf %41, %39 : vector<1x128xf32>
    %47 = arith.subf %44, %46 : vector<1x128xf32>
    %48 = tpu.iota {dimensions = array<i32: 0>} : vector<8x128xi32>
    %c0_i32 = arith.constant 0 : i32
    %49 = vector.broadcast %c0_i32 : i32 to vector<8x128xi32>
    %50 = arith.cmpi eq, %48, %49 : vector<8x128xi32>
    %c1_i32 = arith.constant 1 : i32
    %51 = vector.broadcast %c1_i32 : i32 to vector<8x128xi32>
    %52 = arith.cmpi eq, %48, %51 : vector<8x128xi32>
    %c2_i32 = arith.constant 2 : i32
    %53 = vector.broadcast %c2_i32 : i32 to vector<8x128xi32>
    %54 = arith.cmpi eq, %48, %53 : vector<8x128xi32>
    %cst_26 = arith.constant 0.000000e+00 : f32
    %55 = vector.shape_cast %47 : vector<1x128xf32> to vector<1x128xf32>
    %56 = vector.broadcast %55 : vector<1x128xf32> to vector<8x128xf32>
    %57 = vector.broadcast %cst_26 : f32 to vector<8x128xf32>
    %58 = arith.select %54, %56, %57 : vector<8x128xi1>, vector<8x128xf32>
    %59 = vector.shape_cast %43 : vector<1x128xf32> to vector<1x128xf32>
    %60 = vector.broadcast %59 : vector<1x128xf32> to vector<8x128xf32>
    %61 = arith.select %52, %60, %58 : vector<8x128xi1>, vector<8x128xf32>
    %62 = vector.shape_cast %45 : vector<1x128xf32> to vector<1x128xf32>
    %63 = vector.broadcast %62 : vector<1x128xf32> to vector<8x128xf32>
    %64 = arith.select %50, %63, %61 : vector<8x128xi1>, vector<8x128xf32>
    %c0_27 = arith.constant 0 : index
    %c0_28 = arith.constant 0 : index
    %65 = vector.load %arg9[%c0_27, %c0_28] : memref<8x128xf32, #tpu.memory_space<vmem>>, vector<8x128xf32>
    tpu.vector_store %arg9[%c0_27, %c0_28], %64 {strides = array<i32>} : memref<8x128xf32, #tpu.memory_space<vmem>>, vector<8x128xf32>,
    return
  }
  func.func @transform_0(%arg0: i32) -> (i32, i32) {
    %c0_i32 = arith.constant 0 : i32
    %c0_i32_0 = arith.constant 0 : i32
    return %arg0, %c0_i32 : i32, i32
  }
  func.func @transform_1(%arg0: i32) -> (i32, i32) {
    %c0_i32 = arith.constant 0 : i32
    %c0_i32_0 = arith.constant 0 : i32
    return %arg0, %c0_i32 : i32, i32
  }
  func.func @transform_2(%arg0: i32) -> (i32, i32) {
    %c0_i32 = arith.constant 0 : i32
    %c0_i32_0 = arith.constant 0 : i32
    %c0_i32_1 = arith.constant 0 : i32
    return %c0_i32, %c0_i32_0 : i32, i32
  }
  func.func @transform_3(%arg0: i32) -> (i32, i32) {
    %c0_i32 = arith.constant 0 : i32
    %c0_i32_0 = arith.constant 0 : i32
    %c0_i32_1 = arith.constant 0 : i32
    return %c0_i32, %c0_i32_0 : i32, i32
  }
  func.func @transform_4(%arg0: i32) -> (i32, i32) {
    %c0_i32 = arith.constant 0 : i32
    %c0_i32_0 = arith.constant 0 : i32
    %c0_i32_1 = arith.constant 0 : i32
    return %c0_i32, %c0_i32_0 : i32, i32
  }
  func.func @transform_5(%arg0: i32) -> (i32, i32) {
    %c0_i32 = arith.constant 0 : i32
    %c0_i32_0 = arith.constant 0 : i32
    %c0_i32_1 = arith.constant 0 : i32
    return %c0_i32, %c0_i32_0 : i32, i32
  }
  func.func @transform_6(%arg0: i32) -> (i32, i32) {
    %c0_i32 = arith.constant 0 : i32
    %c0_i32_0 = arith.constant 0 : i32
    %c0_i32_1 = arith.constant 0 : i32
    return %c0_i32, %c0_i32_0 : i32, i32
  }
  func.func @transform_7(%arg0: i32) -> (i32, i32) {
    %c0_i32 = arith.constant 0 : i32
    %c0_i32_0 = arith.constant 0 : i32
    %c0_i32_1 = arith.constant 0 : i32
    return %c0_i32, %c0_i32_0 : i32, i32
  }
  func.func @transform_8(%arg0: i32) -> (i32, i32) {
    %c0_i32 = arith.constant 0 : i32
    %c0_i32_0 = arith.constant 0 : i32
    return %c0_i32, %arg0 : i32, i32
  }
}

</mosaic_0001>

<llo_original>
// kernel: tpu_custom_call.1
$region0: #{tpu_custom_call.1}
  #allocation0 [shape = 'u32[]', space=smem, size = 0x4, offset = 0x4, fixed_abs, tag = 'smem constant byte address 0x4 - core index']
  #allocation1 [shape = 'u32[72,128]{1,0:T(1,128)}', space=vmem, size = 0x9000, scoped, tag = 'internal scratch']
  %s0 = inlined_call_operand.vmem [shape: s32[128,1], index: 0, kind: input, shape index: {}]
  %s1 = inlined_call_operand.vmem [shape: f32[128,16], index: 1, kind: input, shape index: {}]
  %s2 = inlined_call_operand.vmem [shape: f32[16,128], index: 2, kind: input, shape index: {}]
  %s3 = inlined_call_operand.vmem [shape: f32[1,128], index: 3, kind: input, shape index: {}]
  %s4 = inlined_call_operand.vmem [shape: f32[128,128], index: 4, kind: input, shape index: {}]
  %s5 = inlined_call_operand.vmem [shape: f32[1,128], index: 5, kind: input, shape index: {}]
  %s6 = inlined_call_operand.vmem [shape: f32[128,128], index: 6, kind: input, shape index: {}]
  %s7 = inlined_call_operand.vmem [shape: f32[1,128], index: 7, kind: input, shape index: {}]
  %s8 = inlined_call_operand.hbm [shape: f32[8,128], index: 8, kind: output, shape index: {}]
  %s9 = sld [smem:[#allocation0]]
  $region42: #{tpu_custom_call.1} parent=0
    _
  %s11 = ssub.s32 1, %s9
  %s12 = scalar_select 0, %s11, %s9
  $region1: #{tpu_custom_call.1} parent=0
    #allocation2 [shape = 'u8[4096]{0}', space=vmem, size = 0x1000, scoped, tag = 'output window, operand 0, single buffered']
    #allocation3 [shape = 's32[1]{0}', space=sflag, size = 0x4, scoped, tag = 'scoped memory for tpu_custom_call.1']
    %13 = vsyncpa [#allocation3], 0
    // Predicated region
    $region2: #{tpu_custom_call.1} parent=1 // pred_check
      _
    $region3: #{tpu_custom_call.1} parent=1 // pred_check_branch
      %15 = sbr.rel (0) target = $region5
    $region4: #{tpu_custom_call.1} parent=1 // pred_region
      _
    $region5: #{tpu_custom_call.1} parent=1 // pred_fallthru
      _
    // Predicated region
    $region6: #{tpu_custom_call.1} parent=1 // pred_check
      _
    $region7: #{tpu_custom_call.1} parent=1 // pred_check_branch
      %17 = sbr.rel (0) target = $region9
    $region8: #{tpu_custom_call.1} parent=1 // pred_region
      _
    $region9: #{tpu_custom_call.1} parent=1 // pred_fallthru
      _
    // Predicated region
    $region10: #{tpu_custom_call.1} parent=1 // pred_check
      _
    $region11: #{tpu_custom_call.1} parent=1 // pred_check_branch
      %19 = sbr.rel (0) target = $region13
    $region12: #{tpu_custom_call.1} parent=1 // pred_region
      _
    $region13: #{tpu_custom_call.1} parent=1 // pred_fallthru
      _
    // Predicated region
    $region14: #{tpu_custom_call.1} parent=1 // pred_check
      _
    $region15: #{tpu_custom_call.1} parent=1 // pred_check_branch
      %21 = sbr.rel (0) target = $region17
    $region16: #{tpu_custom_call.1} parent=1 // pred_region
      _
    $region17: #{tpu_custom_call.1} parent=1 // pred_fallthru
      _
    // Predicated region
    $region18: #{tpu_custom_call.1} parent=1 // pred_check
      _
    $region19: #{tpu_custom_call.1} parent=1 // pred_check_branch
      %23 = sbr.rel (0) target = $region21
    $region20: #{tpu_custom_call.1} parent=1 // pred_region
      _
    $region21: #{tpu_custom_call.1} parent=1 // pred_fallthru
      _
    // Predicated region
    $region22: #{tpu_custom_call.1} parent=1 // pred_check
      _
    $region23: #{tpu_custom_call.1} parent=1 // pred_check_branch
      %25 = sbr.rel (0) target = $region25
    $region24: #{tpu_custom_call.1} parent=1 // pred_region
      _
    $region25: #{tpu_custom_call.1} parent=1 // pred_fallthru
      _
    // Predicated region
    $region26: #{tpu_custom_call.1} parent=1 // pred_check
      _
    $region27: #{tpu_custom_call.1} parent=1 // pred_check_branch
      %27 = sbr.rel (0) target = $region29
    $region28: #{tpu_custom_call.1} parent=1 // pred_region
      _
    $region29: #{tpu_custom_call.1} parent=1 // pred_fallthru
      _
    // Predicated region
    $region30: #{tpu_custom_call.1} parent=1 // pred_check
      _
    $region31: #{tpu_custom_call.1} parent=1 // pred_check_branch
      %29 = sbr.rel (0) target = $region33
    $region32: #{tpu_custom_call.1} parent=1 // pred_region
      _
    $region33: #{tpu_custom_call.1} parent=1 // pred_fallthru
      _
    %v30 = vld [vmem:[%s1] sm:$0xff]
    %v31 = vld [vmem:[%s1 + $0x8] sm:$0xff]
    %v32 = vld [vmem:[%s1 + $0x10] sm:$0xff]
    %v33 = vld [vmem:[%s1 + $0x18] sm:$0xff]
    %v34 = vld [vmem:[%s1 + $0x20] sm:$0xff]
    %v35 = vld [vmem:[%s1 + $0x28] sm:$0xff]
    %v36 = vld [vmem:[%s1 + $0x30] sm:$0xff]
    %v37 = vld [vmem:[%s1 + $0x38] sm:$0xff]
    %v38 = vld [vmem:[%s1 + $0x40] sm:$0xff]
    %v39 = vld [vmem:[%s1 + $0x48] sm:$0xff]
    %v40 = vld [vmem:[%s1 + $0x50] sm:$0xff]
    %v41 = vld [vmem:[%s1 + $0x58] sm:$0xff]
    %v42 = vld [vmem:[%s1 + $0x60] sm:$0xff]
    %v43 = vld [vmem:[%s1 + $0x68] sm:$0xff]
    %v44 = vld [vmem:[%s1 + $0x70] sm:$0xff]
    %v45 = vld [vmem:[%s1 + $0x78] sm:$0xff]
    %v46 = vld [vmem:[%s2] sm:$0xff]
    %v47 = vld [vmem:[%s2 + $0x8] sm:$0xff]
    %v48 = vld [vmem:[%s3] sm:$0x1]
    %v50 = vperm.slane %v48, 0
    %vm52 = vcmask 130048
    %v54 = vsel %vm52, %v30, 0
    %v57 = vsel %vm52, %v31, 0
    %v60 = vsel %vm52, %v32, 0
    %v63 = vsel %vm52, %v33, 0
    %v66 = vsel %vm52, %v34, 0
    %v69 = vsel %vm52, %v35, 0
    %v72 = vsel %vm52, %v36, 0
    %v75 = vsel %vm52, %v37, 0
    %v78 = vsel %vm52, %v38, 0
    %v81 = vsel %vm52, %v39, 0
    %v84 = vsel %vm52, %v40, 0
    %v87 = vsel %vm52, %v41, 0
    %v90 = vsel %vm52, %v42, 0
    %v93 = vsel %vm52, %v43, 0
    %v96 = vsel %vm52, %v44, 0
    %v99 = vsel %vm52, %v45, 0
    %101 = vmatpush.msra.mxu0 0.0
    %102 = vmatpush.msra.mxu0 0.0
    %103 = vmatpush.msra.mxu0 0.0
    %104 = vmatpush.msra.mxu0 0.0
    %105 = vmatpush.msra.mxu0 0.0
    %106 = vmatpush.msra.mxu0 0.0
    %107 = vmatpush.msra.mxu0 0.0
    %108 = vmatpush.msra.mxu0 0.0
    %109 = vmatpush.msra.mxu0 0.0
    %110 = vmatpush.msra.mxu0 0.0
    %111 = vmatpush.msra.mxu0 0.0
    %112 = vmatpush.msra.mxu0 0.0
    %113 = vmatpush.msra.mxu0 0.0
    %114 = vmatpush.msra.mxu0 0.0
    %115 = vmatpush.msra.mxu0 %v47
    %116 = vmatpush.msra.mxu0 %v46
    %117 = vmatmul.f32.gmra.mxu0 %v54
    %v118 = vpop.f32.mrf.mxu0
    %v119 = vadd.f32 %v50, %v118
    %120 = vmatmul.f32.gmra.mxu0 %v57
    %v121 = vpop.f32.mrf.mxu0
    %v122 = vadd.f32 %v50, %v121
    %123 = vmatmul.f32.gmra.mxu0 %v60
    %v124 = vpop.f32.mrf.mxu0
    %v125 = vadd.f32 %v50, %v124
    %126 = vmatmul.f32.gmra.mxu0 %v63
    %v127 = vpop.f32.mrf.mxu0
    %v128 = vadd.f32 %v50, %v127
    %129 = vmatmul.f32.gmra.mxu0 %v66
    %v130 = vpop.f32.mrf.mxu0
    %v131 = vadd.f32 %v50, %v130
    %132 = vmatmul.f32.gmra.mxu0 %v69
    %v133 = vpop.f32.mrf.mxu0
    %v134 = vadd.f32 %v50, %v133
    %135 = vmatmul.f32.gmra.mxu0 %v72
    %v136 = vpop.f32.mrf.mxu0
    %v137 = vadd.f32 %v50, %v136
    %138 = vmatmul.f32.gmra.mxu0 %v75
    %v139 = vpop.f32.mrf.mxu0
    %v140 = vadd.f32 %v50, %v139
    %141 = vmatmul.f32.gmra.mxu0 %v78
    %v142 = vpop.f32.mrf.mxu0
    %v143 = vadd.f32 %v50, %v142
    %144 = vmatmul.f32.gmra.mxu0 %v81
    %v145 = vpop.f32.mrf.mxu0
    %v146 = vadd.f32 %v50, %v145
    %147 = vmatmul.f32.gmra.mxu0 %v84
    %v148 = vpop.f32.mrf.mxu0
    %v149 = vadd.f32 %v50, %v148
    %150 = vmatmul.f32.gmra.mxu0 %v87
    %v151 = vpop.f32.mrf.mxu0
    %v152 = vadd.f32 %v50, %v151
    %153 = vmatmul.f32.gmra.mxu0 %v90
    %v154 = vpop.f32.mrf.mxu0
    %v155 = vadd.f32 %v50, %v154
    %156 = vmatmul.f32.gmra.mxu0 %v93
    %v157 = vpop.f32.mrf.mxu0
    %v158 = vadd.f32 %v50, %v157
    %159 = vmatmul.f32.gmra.mxu0 %v96
    %v160 = vpop.f32.mrf.mxu0
    %v161 = vadd.f32 %v50, %v160
    %162 = vmatmul.f32.gmra.mxu0 %v99
    %v163 = vpop.f32.mrf.mxu0
    %v164 = vadd.f32 %v50, %v163
    %165 = vdwg.mxu0
    %v166 = vtanh.pop %v119
    %v167 = vtanh.pop %v122
    %v168 = vtanh.pop %v125
    %v169 = vtanh.pop %v128
    %v170 = vtanh.pop %v131
    %v171 = vtanh.pop %v134
    %v172 = vtanh.pop %v137
    %v173 = vtanh.pop %v140
    %v174 = vtanh.pop %v143
    %v175 = vtanh.pop %v146
    %v176 = vtanh.pop %v149
    %v177 = vtanh.pop %v152
    %v178 = vtanh.pop %v155
    %v179 = vtanh.pop %v158
    %v180 = vtanh.pop %v161
    %v181 = vtanh.pop %v164
    %v182 = vld [vmem:[%s4] sm:$0xff]
    %v183 = vld [vmem:[%s4 + $0x8] sm:$0xff]
    %v184 = vld [vmem:[%s4 + $0x10] sm:$0xff]
    %v185 = vld [vmem:[%s4 + $0x18] sm:$0xff]
    %v186 = vld [vmem:[%s4 + $0x20] sm:$0xff]
    %v187 = vld [vmem:[%s4 + $0x28] sm:$0xff]
    %v188 = vld [vmem:[%s4 + $0x30] sm:$0xff]
    %v189 = vld [vmem:[%s4 + $0x38] sm:$0xff]
    %v190 = vld [vmem:[%s4 + $0x40] sm:$0xff]
    %v191 = vld [vmem:[%s4 + $0x48] sm:$0xff]
    %v192 = vld [vmem:[%s4 + $0x50] sm:$0xff]
    %v193 = vld [vmem:[%s4 + $0x58] sm:$0xff]
    %v194 = vld [vmem:[%s4 + $0x60] sm:$0xff]
    %v195 = vld [vmem:[%s4 + $0x68] sm:$0xff]
    %v196 = vld [vmem:[%s4 + $0x70] sm:$0xff]
    %v197 = vld [vmem:[%s4 + $0x78] sm:$0xff]
    %v198 = vld [vmem:[%s5] sm:$0x1]
    %v200 = vperm.slane %v198, 0
    %202 = vmatpush.msra.mxu0 %v197
    %203 = vmatpush.msra.mxu0 %v196
    %204 = vmatpush.msra.mxu0 %v195
    %205 = vmatpush.msra.mxu0 %v194
    %206 = vmatpush.msra.mxu0 %v193
    %207 = vmatpush.msra.mxu0 %v192
    %208 = vmatpush.msra.mxu0 %v191
    %209 = vmatpush.msra.mxu0 %v190
    %210 = vmatpush.msra.mxu0 %v189
    %211 = vmatpush.msra.mxu0 %v188
    %212 = vmatpush.msra.mxu0 %v187
    %213 = vmatpush.msra.mxu0 %v186
    %214 = vmatpush.msra.mxu0 %v185
    %215 = vmatpush.msra.mxu0 %v184
    %216 = vmatpush.msra.mxu0 %v183
    %217 = vmatpush.msra.mxu0 %v182
    %218 = vmatmul.f32.gmra.mxu0 %v166
    %v219 = vpop.f32.mrf.mxu0
    %v220 = vadd.f32 %v200, %v219
    %221 = vmatmul.f32.gmra.mxu0 %v167
    %v222 = vpop.f32.mrf.mxu0
    %v223 = vadd.f32 %v200, %v222
    %224 = vmatmul.f32.gmra.mxu0 %v168
    %v225 = vpop.f32.mrf.mxu0
    %v226 = vadd.f32 %v200, %v225
    %227 = vmatmul.f32.gmra.mxu0 %v169
    %v228 = vpop.f32.mrf.mxu0
    %v229 = vadd.f32 %v200, %v228
    %230 = vmatmul.f32.gmra.mxu0 %v170
    %v231 = vpop.f32.mrf.mxu0
    %v232 = vadd.f32 %v200, %v231
    %233 = vmatmul.f32.gmra.mxu0 %v171
    %v234 = vpop.f32.mrf.mxu0
    %v235 = vadd.f32 %v200, %v234
    %236 = vmatmul.f32.gmra.mxu0 %v172
    %v237 = vpop.f32.mrf.mxu0
    %v238 = vadd.f32 %v200, %v237
    %239 = vmatmul.f32.gmra.mxu0 %v173
    %v240 = vpop.f32.mrf.mxu0
    %v241 = vadd.f32 %v200, %v240
    %242 = vmatmul.f32.gmra.mxu0 %v174
    %v243 = vpop.f32.mrf.mxu0
    %v244 = vadd.f32 %v200, %v243
    %245 = vmatmul.f32.gmra.mxu0 %v175
    %v246 = vpop.f32.mrf.mxu0
    %v247 = vadd.f32 %v200, %v246
    %248 = vmatmul.f32.gmra.mxu0 %v176
    %v249 = vpop.f32.mrf.mxu0
    %v250 = vadd.f32 %v200, %v249
    %251 = vmatmul.f32.gmra.mxu0 %v177
    %v252 = vpop.f32.mrf.mxu0
    %v253 = vadd.f32 %v200, %v252
    %254 = vmatmul.f32.gmra.mxu0 %v178
    %v255 = vpop.f32.mrf.mxu0
    %v256 = vadd.f32 %v200, %v255
    %257 = vmatmul.f32.gmra.mxu0 %v179
    %v258 = vpop.f32.mrf.mxu0
    %v259 = vadd.f32 %v200, %v258
    %260 = vmatmul.f32.gmra.mxu0 %v180
    %v261 = vpop.f32.mrf.mxu0
    %v262 = vadd.f32 %v200, %v261
    %263 = vmatmul.f32.gmra.mxu0 %v181
    %v264 = vpop.f32.mrf.mxu0
    %v265 = vadd.f32 %v200, %v264
    %266 = vdwg.mxu0
    %v267 = vtanh.pop %v220
    %v268 = vtanh.pop %v223
    %v269 = vtanh.pop %v226
    %v270 = vtanh.pop %v229
    %v271 = vtanh.pop %v232
    %v272 = vtanh.pop %v235
    %v273 = vtanh.pop %v238
    %v274 = vtanh.pop %v241
    %v275 = vtanh.pop %v244
    %v276 = vtanh.pop %v247
    %v277 = vtanh.pop %v250
    %v278 = vtanh.pop %v253
    %v279 = vtanh.pop %v256
    %v280 = vtanh.pop %v259
    %v281 = vtanh.pop %v262
    %v282 = vtanh.pop %v265
    %v283 = vld [vmem:[%s6] sm:$0xff]
    %v284 = vld [vmem:[%s6 + $0x8] sm:$0xff]
    %v285 = vld [vmem:[%s6 + $0x10] sm:$0xff]
    %v286 = vld [vmem:[%s6 + $0x18] sm:$0xff]
    %v287 = vld [vmem:[%s6 + $0x20] sm:$0xff]
    %v288 = vld [vmem:[%s6 + $0x28] sm:$0xff]
    %v289 = vld [vmem:[%s6 + $0x30] sm:$0xff]
    %v290 = vld [vmem:[%s6 + $0x38] sm:$0xff]
    %v291 = vld [vmem:[%s6 + $0x40] sm:$0xff]
    %v292 = vld [vmem:[%s6 + $0x48] sm:$0xff]
    %v293 = vld [vmem:[%s6 + $0x50] sm:$0xff]
    %v294 = vld [vmem:[%s6 + $0x58] sm:$0xff]
    %v295 = vld [vmem:[%s6 + $0x60] sm:$0xff]
    %v296 = vld [vmem:[%s6 + $0x68] sm:$0xff]
    %v297 = vld [vmem:[%s6 + $0x70] sm:$0xff]
    %v298 = vld [vmem:[%s6 + $0x78] sm:$0xff]
    %v299 = vld [vmem:[%s7] sm:$0x1]
    %v301 = vperm.slane %v299, 0
    %303 = vmatpush.msra.mxu0 %v298
    %304 = vmatpush.msra.mxu0 %v297
    %305 = vmatpush.msra.mxu0 %v296
    %306 = vmatpush.msra.mxu0 %v295
    %307 = vmatpush.msra.mxu0 %v294
    %308 = vmatpush.msra.mxu0 %v293
    %309 = vmatpush.msra.mxu0 %v292
    %310 = vmatpush.msra.mxu0 %v291
    %311 = vmatpush.msra.mxu0 %v290
    %312 = vmatpush.msra.mxu0 %v289
    %313 = vmatpush.msra.mxu0 %v288
    %314 = vmatpush.msra.mxu0 %v287
    %315 = vmatpush.msra.mxu0 %v286
    %316 = vmatpush.msra.mxu0 %v285
    %317 = vmatpush.msra.mxu0 %v284
    %318 = vmatpush.msra.mxu0 %v283
    %319 = vmatmul.f32.gmra.mxu0 %v267
    %v320 = vpop.f32.mrf.mxu0
    %v321 = vadd.f32 %v301, %v320
    %322 = vmatmul.f32.gmra.mxu0 %v268
    %v323 = vpop.f32.mrf.mxu0
    %v324 = vadd.f32 %v301, %v323
    %325 = vmatmul.f32.gmra.mxu0 %v269
    %v326 = vpop.f32.mrf.mxu0
    %v327 = vadd.f32 %v301, %v326
    %328 = vmatmul.f32.gmra.mxu0 %v270
    %v329 = vpop.f32.mrf.mxu0
    %v330 = vadd.f32 %v301, %v329
    %331 = vmatmul.f32.gmra.mxu0 %v271
    %v332 = vpop.f32.mrf.mxu0
    %v333 = vadd.f32 %v301, %v332
    %334 = vmatmul.f32.gmra.mxu0 %v272
    %v335 = vpop.f32.mrf.mxu0
    %v336 = vadd.f32 %v301, %v335
    %337 = vmatmul.f32.gmra.mxu0 %v273
    %v338 = vpop.f32.mrf.mxu0
    %v339 = vadd.f32 %v301, %v338
    %340 = vmatmul.f32.gmra.mxu0 %v274
    %v341 = vpop.f32.mrf.mxu0
    %v342 = vadd.f32 %v301, %v341
    %343 = vmatmul.f32.gmra.mxu0 %v275
    %v344 = vpop.f32.mrf.mxu0
    %v345 = vadd.f32 %v301, %v344
    %346 = vmatmul.f32.gmra.mxu0 %v276
    %v347 = vpop.f32.mrf.mxu0
    %v348 = vadd.f32 %v301, %v347
    %349 = vmatmul.f32.gmra.mxu0 %v277
    %v350 = vpop.f32.mrf.mxu0
    %v351 = vadd.f32 %v301, %v350
    %352 = vmatmul.f32.gmra.mxu0 %v278
    %v353 = vpop.f32.mrf.mxu0
    %v354 = vadd.f32 %v301, %v353
    %355 = vmatmul.f32.gmra.mxu0 %v279
    %v356 = vpop.f32.mrf.mxu0
    %v357 = vadd.f32 %v301, %v356
    %358 = vmatmul.f32.gmra.mxu0 %v280
    %v359 = vpop.f32.mrf.mxu0
    %v360 = vadd.f32 %v301, %v359
    %361 = vmatmul.f32.gmra.mxu0 %v281
    %v362 = vpop.f32.mrf.mxu0
    %v363 = vadd.f32 %v301, %v362
    %364 = vmatmul.f32.gmra.mxu0 %v282
    %v365 = vpop.f32.mrf.mxu0
    %v366 = vadd.f32 %v301, %v365
    %367 = vdwg.mxu0
    %v368 = vlaneseq
    %v369 = vand.u32 %v368, 127
    %vm370 = vcmp.lt.s32.totalorder %v369, 8
    %v371 = vsel %vm370, %v321, -1e+09
    %v372 = vsel %vm370, %v324, -1e+09
    %v373 = vsel %vm370, %v327, -1e+09
    %v374 = vsel %vm370, %v330, -1e+09
    %v375 = vsel %vm370, %v333, -1e+09
    %v376 = vsel %vm370, %v336, -1e+09
    %v377 = vsel %vm370, %v339, -1e+09
    %v378 = vsel %vm370, %v342, -1e+09
    %v379 = vsel %vm370, %v345, -1e+09
    %v380 = vsel %vm370, %v348, -1e+09
    %v381 = vsel %vm370, %v351, -1e+09
    %v382 = vsel %vm370, %v354, -1e+09
    %v383 = vsel %vm370, %v357, -1e+09
    %v384 = vsel %vm370, %v360, -1e+09
    %v385 = vsel %vm370, %v363, -1e+09
    %v386 = vsel %vm370, %v366, -1e+09
    %387 = vmax.xlane.f32.xlu0 %v371
    %v388 = vpop.xlane.xlu0 %387
    %389 = vmax.xlane.f32.xlu0 %v372
    %v390 = vpop.xlane.xlu0 %389
    %391 = vmax.xlane.f32.xlu0 %v373
    %v392 = vpop.xlane.xlu0 %391
    %393 = vmax.xlane.f32.xlu0 %v374
    %v394 = vpop.xlane.xlu0 %393
    %395 = vmax.xlane.f32.xlu0 %v375
    %v396 = vpop.xlane.xlu0 %395
    %397 = vmax.xlane.f32.xlu0 %v376
    %v398 = vpop.xlane.xlu0 %397
    %399 = vmax.xlane.f32.xlu0 %v377
    %v400 = vpop.xlane.xlu0 %399
    %401 = vmax.xlane.f32.xlu0 %v378
    %v402 = vpop.xlane.xlu0 %401
    %403 = vmax.xlane.f32.xlu0 %v379
    %v404 = vpop.xlane.xlu0 %403
    %405 = vmax.xlane.f32.xlu0 %v380
    %v406 = vpop.xlane.xlu0 %405
    %407 = vmax.xlane.f32.xlu0 %v381
    %v408 = vpop.xlane.xlu0 %407
    %409 = vmax.xlane.f32.xlu0 %v382
    %v410 = vpop.xlane.xlu0 %409
    %411 = vmax.xlane.f32.xlu0 %v383
    %v412 = vpop.xlane.xlu0 %411
    %413 = vmax.xlane.f32.xlu0 %v384
    %v414 = vpop.xlane.xlu0 %413
    %415 = vmax.xlane.f32.xlu0 %v385
    %v416 = vpop.xlane.xlu0 %415
    %417 = vmax.xlane.f32.xlu0 %v386
    %v418 = vpop.xlane.xlu0 %417
    %v419 = vsub.f32 %v371, %v388
    %v420 = vsub.f32 %v372, %v390
    %v421 = vsub.f32 %v373, %v392
    %v422 = vsub.f32 %v374, %v394
    %v423 = vsub.f32 %v375, %v396
    %v424 = vsub.f32 %v376, %v398
    %v425 = vsub.f32 %v377, %v400
    %v426 = vsub.f32 %v378, %v402
    %v427 = vsub.f32 %v379, %v404
    %v428 = vsub.f32 %v380, %v406
    %v429 = vsub.f32 %v381, %v408
    %v430 = vsub.f32 %v382, %v410
    %v431 = vsub.f32 %v383, %v412
    %v432 = vsub.f32 %v384, %v414
    %v433 = vsub.f32 %v385, %v416
    %v434 = vsub.f32 %v386, %v418
    %v435 = vmul.f32 %v419, 1.442695
    %v436 = vpow.pop %v435
    %v437 = vmul.f32 %v420, 1.442695
    %v438 = vpow.pop %v437
    %v439 = vmul.f32 %v421, 1.442695
    %v440 = vpow.pop %v439
    %v441 = vmul.f32 %v422, 1.442695
    %v442 = vpow.pop %v441
    %v443 = vmul.f32 %v423, 1.442695
    %v444 = vpow.pop %v443
    %v445 = vmul.f32 %v424, 1.442695
    %v446 = vpow.pop %v445
    %v447 = vmul.f32 %v425, 1.442695
    %v448 = vpow.pop %v447
    %v449 = vmul.f32 %v426, 1.442695
    %v450 = vpow.pop %v449
    %v451 = vmul.f32 %v427, 1.442695
    %v452 = vpow.pop %v451
    %v453 = vmul.f32 %v428, 1.442695
    %v454 = vpow.pop %v453
    %v455 = vmul.f32 %v429, 1.442695
    %v456 = vpow.pop %v455
    %v457 = vmul.f32 %v430, 1.442695
    %v458 = vpow.pop %v457
    %v459 = vmul.f32 %v431, 1.442695
    %v460 = vpow.pop %v459
    %v461 = vmul.f32 %v432, 1.442695
    %v462 = vpow.pop %v461
    %v463 = vmul.f32 %v433, 1.442695
    %v464 = vpow.pop %v463
    %v465 = vmul.f32 %v434, 1.442695
    %v466 = vpow.pop %v465
    %v467 = vld [vmem:[%s0] sm:$0xff]
    %v468 = vld [vmem:[%s0 + $0x8] sm:$0xff]
    %v469 = vld [vmem:[%s0 + $0x10] sm:$0xff]
    %v470 = vld [vmem:[%s0 + $0x18] sm:$0xff]
    %v471 = vld [vmem:[%s0 + $0x20] sm:$0xff]
    %v472 = vld [vmem:[%s0 + $0x28] sm:$0xff]
    %v473 = vld [vmem:[%s0 + $0x30] sm:$0xff]
    %v474 = vld [vmem:[%s0 + $0x38] sm:$0xff]
    %v475 = vld [vmem:[%s0 + $0x40] sm:$0xff]
    %v476 = vld [vmem:[%s0 + $0x48] sm:$0xff]
    %v477 = vld [vmem:[%s0 + $0x50] sm:$0xff]
    %v478 = vld [vmem:[%s0 + $0x58] sm:$0xff]
    %v479 = vld [vmem:[%s0 + $0x60] sm:$0xff]
    %v480 = vld [vmem:[%s0 + $0x68] sm:$0xff]
    %v481 = vld [vmem:[%s0 + $0x70] sm:$0xff]
    %v482 = vld [vmem:[%s0 + $0x78] sm:$0xff]
    %483 = vset.pattern.permute.xlu0 0
    %484 = vperm.xlu0 %483, %v467
    %v485 = vpop.permute.xlu0 %484
    %486 = vset.pattern.permute.xlu0 0
    %487 = vperm.xlu0 %486, %v468
    %v488 = vpop.permute.xlu0 %487
    %489 = vset.pattern.permute.xlu0 0
    %490 = vperm.xlu0 %489, %v469
    %v491 = vpop.permute.xlu0 %490
    %492 = vset.pattern.permute.xlu0 0
    %493 = vperm.xlu0 %492, %v470
    %v494 = vpop.permute.xlu0 %493
    %495 = vset.pattern.permute.xlu0 0
    %496 = vperm.xlu0 %495, %v471
    %v497 = vpop.permute.xlu0 %496
    %498 = vset.pattern.permute.xlu0 0
    %499 = vperm.xlu0 %498, %v472
    %v500 = vpop.permute.xlu0 %499
    %501 = vset.pattern.permute.xlu0 0
    %502 = vperm.xlu0 %501, %v473
    %v503 = vpop.permute.xlu0 %502
    %504 = vset.pattern.permute.xlu0 0
    %505 = vperm.xlu0 %504, %v474
    %v506 = vpop.permute.xlu0 %505
    %507 = vset.pattern.permute.xlu0 0
    %508 = vperm.xlu0 %507, %v475
    %v509 = vpop.permute.xlu0 %508
    %510 = vset.pattern.permute.xlu0 0
    %511 = vperm.xlu0 %510, %v476
    %v512 = vpop.permute.xlu0 %511
    %513 = vset.pattern.permute.xlu0 0
    %514 = vperm.xlu0 %513, %v477
    %v515 = vpop.permute.xlu0 %514
    %516 = vset.pattern.permute.xlu0 0
    %517 = vperm.xlu0 %516, %v478
    %v518 = vpop.permute.xlu0 %517
    %519 = vset.pattern.permute.xlu0 0
    %520 = vperm.xlu0 %519, %v479
    %v521 = vpop.permute.xlu0 %520
    %522 = vset.pattern.permute.xlu0 0
    %523 = vperm.xlu0 %522, %v480
    %v524 = vpop.permute.xlu0 %523
    %525 = vset.pattern.permute.xlu0 0
    %526 = vperm.xlu0 %525, %v481
    %v527 = vpop.permute.xlu0 %526
    %528 = vset.pattern.permute.xlu0 0
    %529 = vperm.xlu0 %528, %v482
    %v530 = vpop.permute.xlu0 %529
    %vm531 = vcmp.eq.s32.totalorder %v369, %v485
    %vm532 = vcmp.eq.s32.totalorder %v369, %v488
    %vm533 = vcmp.eq.s32.totalorder %v369, %v491
    %vm534 = vcmp.eq.s32.totalorder %v369, %v494
    %vm535 = vcmp.eq.s32.totalorder %v369, %v497
    %vm536 = vcmp.eq.s32.totalorder %v369, %v500
    %vm537 = vcmp.eq.s32.totalorder %v369, %v503
    %vm538 = vcmp.eq.s32.totalorder %v369, %v506
    %vm539 = vcmp.eq.s32.totalorder %v369, %v509
    %vm540 = vcmp.eq.s32.totalorder %v369, %v512
    %vm541 = vcmp.eq.s32.totalorder %v369, %v515
    %vm542 = vcmp.eq.s32.totalorder %v369, %v518
    %vm543 = vcmp.eq.s32.totalorder %v369, %v521
    %vm544 = vcmp.eq.s32.totalorder %v369, %v524
    %vm545 = vcmp.eq.s32.totalorder %v369, %v527
    %vm546 = vcmp.eq.s32.totalorder %v369, %v530
    %v547 = vsel %vm531, %v419, 0.0
    %v548 = vsel %vm532, %v420, 0.0
    %v549 = vsel %vm533, %v421, 0.0
    %v550 = vsel %vm534, %v422, 0.0
    %v551 = vsel %vm535, %v423, 0.0
    %v552 = vsel %vm536, %v424, 0.0
    %v553 = vsel %vm537, %v425, 0.0
    %v554 = vsel %vm538, %v426, 0.0
    %v555 = vsel %vm539, %v427, 0.0
    %v556 = vsel %vm540, %v428, 0.0
    %v557 = vsel %vm541, %v429, 0.0
    %v558 = vsel %vm542, %v430, 0.0
    %v559 = vsel %vm543, %v431, 0.0
    %v560 = vsel %vm544, %v432, 0.0
    %v561 = vsel %vm545, %v433, 0.0
    %v562 = vsel %vm546, %v434, 0.0
    %vm563 = vcmp.eq.s32.totalorder %v369, 8
    %v564 = vsel %vm563, 1, 0
    %v565 = vcvt.s32.f32 %v564
    %566 = vmatpush.xpose.msra.mxu0 %v466
    %567 = vmatpush.xpose.msra.mxu0 %v464
    %568 = vmatpush.xpose.msra.mxu0 %v462
    %569 = vmatpush.xpose.msra.mxu0 %v460
    %570 = vmatpush.xpose.msra.mxu0 %v458
    %571 = vmatpush.xpose.msra.mxu0 %v456
    %572 = vmatpush.xpose.msra.mxu0 %v454
    %573 = vmatpush.xpose.msra.mxu0 %v452
    %574 = vmatpush.xpose.msra.mxu0 %v450
    %575 = vmatpush.xpose.msra.mxu0 %v448
    %576 = vmatpush.xpose.msra.mxu0 %v446
    %577 = vmatpush.xpose.msra.mxu0 %v444
    %578 = vmatpush.xpose.msra.mxu0 %v442
    %579 = vmatpush.xpose.msra.mxu0 %v440
    %580 = vmatpush.xpose.msra.mxu0 %v438
    %581 = vmatpush.xpose.msra.mxu0 %v436
    %582 = vmatmul.f32.gmra.mxu0 1.0
    %v583 = vpop.f32.mrf.mxu0
    %v584 = vadd.f32 0.0, %v583
    %585 = vdwg.mxu0
    %v586 = vmul.f32 %v436, %v419
    %v587 = vmul.f32 %v438, %v420
    %v588 = vmul.f32 %v440, %v421
    %v589 = vmul.f32 %v442, %v422
    %v590 = vmul.f32 %v444, %v423
    %v591 = vmul.f32 %v446, %v424
    %v592 = vmul.f32 %v448, %v425
    %v593 = vmul.f32 %v450, %v426
    %v594 = vmul.f32 %v452, %v427
    %v595 = vmul.f32 %v454, %v428
    %v596 = vmul.f32 %v456, %v429
    %v597 = vmul.f32 %v458, %v430
    %v598 = vmul.f32 %v460, %v431
    %v599 = vmul.f32 %v462, %v432
    %v600 = vmul.f32 %v464, %v433
    %v601 = vmul.f32 %v466, %v434
    %602 = vmatpush.xpose.msra.mxu0 %v601
    %603 = vmatpush.xpose.msra.mxu0 %v600
    %604 = vmatpush.xpose.msra.mxu0 %v599
    %605 = vmatpush.xpose.msra.mxu0 %v598
    %606 = vmatpush.xpose.msra.mxu0 %v597
    %607 = vmatpush.xpose.msra.mxu0 %v596
    %608 = vmatpush.xpose.msra.mxu0 %v595
    %609 = vmatpush.xpose.msra.mxu0 %v594
    %610 = vmatpush.xpose.msra.mxu0 %v593
    %611 = vmatpush.xpose.msra.mxu0 %v592
    %612 = vmatpush.xpose.msra.mxu0 %v591
    %613 = vmatpush.xpose.msra.mxu0 %v590
    %614 = vmatpush.xpose.msra.mxu0 %v589
    %615 = vmatpush.xpose.msra.mxu0 %v588
    %616 = vmatpush.xpose.msra.mxu0 %v587
    %617 = vmatpush.xpose.msra.mxu0 %v586
    %618 = vmatmul.f32.gmra.mxu0 1.0
    %v619 = vpop.f32.mrf.mxu0
    %v620 = vadd.f32 0.0, %v619
    %621 = vdwg.mxu0
    %622 = vmatpush.xpose.msra.mxu0 %v562
    %623 = vmatpush.xpose.msra.mxu0 %v561
    %624 = vmatpush.xpose.msra.mxu0 %v560
    %625 = vmatpush.xpose.msra.mxu0 %v559
    %626 = vmatpush.xpose.msra.mxu0 %v558
    %627 = vmatpush.xpose.msra.mxu0 %v557
    %628 = vmatpush.xpose.msra.mxu0 %v556
    %629 = vmatpush.xpose.msra.mxu0 %v555
    %630 = vmatpush.xpose.msra.mxu0 %v554
    %631 = vmatpush.xpose.msra.mxu0 %v553
    %632 = vmatpush.xpose.msra.mxu0 %v552
    %633 = vmatpush.xpose.msra.mxu0 %v551
    %634 = vmatpush.xpose.msra.mxu0 %v550
    %635 = vmatpush.xpose.msra.mxu0 %v549
    %636 = vmatpush.xpose.msra.mxu0 %v548
    %637 = vmatpush.xpose.msra.mxu0 %v547
    %638 = vmatmul.f32.gmra.mxu0 1.0
    %v639 = vpop.f32.mrf.mxu0
    %v640 = vadd.f32 0.0, %v639
    %641 = vdwg.mxu0
    %642 = vmatpush.xpose.msra.mxu0 %v366
    %643 = vmatpush.xpose.msra.mxu0 %v363
    %644 = vmatpush.xpose.msra.mxu0 %v360
    %645 = vmatpush.xpose.msra.mxu0 %v357
    %646 = vmatpush.xpose.msra.mxu0 %v354
    %647 = vmatpush.xpose.msra.mxu0 %v351
    %648 = vmatpush.xpose.msra.mxu0 %v348
    %649 = vmatpush.xpose.msra.mxu0 %v345
    %650 = vmatpush.xpose.msra.mxu0 %v342
    %651 = vmatpush.xpose.msra.mxu0 %v339
    %652 = vmatpush.xpose.msra.mxu0 %v336
    %653 = vmatpush.xpose.msra.mxu0 %v333
    %654 = vmatpush.xpose.msra.mxu0 %v330
    %655 = vmatpush.xpose.msra.mxu0 %v327
    %656 = vmatpush.xpose.msra.mxu0 %v324
    %657 = vmatpush.xpose.msra.mxu0 %v321
    %658 = vmatmul.f32.gmra.mxu0 %v565
    %v659 = vpop.f32.mrf.mxu0
    %v660 = vadd.f32 0.0, %v659
    %661 = vdwg.mxu0
    %v662 = vlog2.pop %v584
    %v663 = vmul.f32 %v662, 0.6931472
    %v664 = vsub.f32 %v640, %v663
    %v665 = vrcp.pop %v584
    %v666 = vmul.f32 %v584, %v665
    %v667 = vsub.f32 1.0, %v666
    %v668 = vmul.f32 %v665, %v667
    %v669 = vadd.f32 %v665, %v668
    %vm670 = vweird.f32 %v584
    %vm671 = vweird.f32 %v665
    %vm672 = vmor %vm670, %vm671
    %v673 = vsel %vm672, %v665, %v669
    %v674 = vand.u32 2147483647, %v584
    %vm675 = vcmp.eq.f32.partialorder %v674, 8.507059e+37
    %v676 = vand.u32 %v584, 2147483648
    %v677 = vor.u32 1.1754944e-38, %v676
    %v678 = vsel %vm675, %v677, %v673
    %v679 = vmul.f32 %v620, %v678
    %v680 = vsub.f32 %v663, %v679
    %v681 = vlaneseq
    %v682 = vshrl.u32 %v681, 7
    %vm683 = vcmp.eq.s32.totalorder %v682, 0
    %vm684 = vcmp.eq.s32.totalorder %v682, 1
    %vm685 = vcmp.eq.s32.totalorder %v682, 2
    %v686 = vperm.slane %v680, 0
    %v687 = vsel %vm685, %v686, 0.0
    %v688 = vperm.slane %v660, 0
    %v689 = vsel %vm684, %v688, %v687
    %v690 = vperm.slane %v664, 0
    %v691 = vsel %vm683, %v690, %v689
    %692 = vst [vmem:[#allocation2] sm:$0xff] %v691
    // Predicated region
    $region34: #{tpu_custom_call.1} parent=1 // pred_check
      _
    $region35: #{tpu_custom_call.1} parent=1 // pred_check_branch
      %694 = sbr.rel (0) target = $region37
    $region36: #{tpu_custom_call.1} parent=1 // pred_region
      %696 = vsyncadd [#allocation3], 0
      %s698 = sshll.u32 [#allocation2], 4
      %s699 = int_to_ptr.vmem [resolvable:$true] %s698
      %s700 = sshll.u32 %s8, 4
      %s701 = int_to_ptr.hbm [resolvable:$true] %s700
      %703 = dma.vmem_to_hbm [thread:$0]  %s699, 128, %s701, [#allocation3]
    $region37: #{tpu_custom_call.1} parent=1 // pred_fallthru
      _
    // Predicated region
    $region38: #{tpu_custom_call.1} parent=1 // pred_check
      _
    $region39: #{tpu_custom_call.1} parent=1 // pred_check_branch
      %705 = sbr.rel (0) target = $region41
    $region40: #{tpu_custom_call.1} parent=1 // pred_region
      %707 = dma.done [#allocation3], 128
    $region41: #{tpu_custom_call.1} parent=1 // pred_fallthru
      _
    %708 = vsyncpa [#allocation3], 1

</llo_original>
